<compile_context>
chip_gen: v7x
topology: tpu7x:2x2x1
jax: 0.10.0
libtpu: 0.0.40
codegen_flags: <defaults>
</compile_context>

<pallas_src>
import math

import jax
import jax.numpy as jnp
from jax.experimental import pallas as pl
from jax.experimental.pallas import tpu as pltpu

_NUM_ACTS = 5
_LANE = 128
_SUBLANE = 8
_MAX_TILE_ROWS = 8192        # 8192 x 128 f32 = 4 MiB per block
_MIN_SPLIT_ROWS = 2048       # below ~1 MiB f32 the extra grid steps cost more
                             # than a second TensorCore saves
_GELU_C = math.sqrt(2.0 / math.pi)
_GELU_2C = 2.0 * _GELU_C
_GELU_2CB = 2.0 * _GELU_C * 0.044715


def _round_up(a, b):
    return (a + b - 1) // b * b


def _num_tensorcores():
    """Best-effort TensorCores-per-chip query (v7x: 2, v5e/v6e: 1).

    Any failure falls back to 1 (no forced grid splitting), which is always
    correct and optimal on single-TC chips.  The result is clamped to [1, 2].
    """
    for getter in (
        lambda: pltpu.get_tpu_info(),
        lambda: jax.devices()[0],
    ):
        try:
            obj = getter()
        except Exception:
            continue
        for attr in ("num_cores", "tensor_cores_per_chip", "num_tensorcores",
                     "cores_per_chip", "core_count"):
            v = getattr(obj, attr, None)
            if v is None:
                continue
            try:
                v = int(v)
            except Exception:
                continue
            if v > 0:
                return max(1, min(v, 2))
    return 1


def _mixed_activation_kernel(k_ref, x_ref, o_ref):
    """k_ref: SMEM (5,) scalar-prefetched coefficients; x_ref/o_ref: VMEM tiles.

    out = x * S with
      S = where(x>=0, k0, k1) + k2*sigmoid(x) + k3*tanh(softplus(x)) - k4/d3
    where d3 = exp(2*gelu_arg) + 1 (so -k4/d3 carries the gelu tanh term) and
    the three fractions share ONE reciprocal over the merged denominator
    d1*d2*d3: per element that is 2 exp + 1 vrcp on the EUP plus one Newton
    step on the VPU.
    """
    x = x_ref[...].astype(jnp.float32)

    # Shared exponential for swish + mish.  Clamp at 15 keeps the merged
    # product denominator (~2.5e30) well inside f32 range; for x > 15 both
    # sigmoid(x) and tanh(softplus(x)) are 1.0 to within ~3e-7 anyway.
    t = jnp.exp(jnp.minimum(x, 15.0))
    d1 = t + 1.0                       # sigmoid(x)        = t / d1
    num = t * (t + 2.0)                # (1+t)^2 - 1, cancellation-free
    d2 = num + 2.0                     # tanh(softplus(x)) = num / d2

    # gelu (tanh approximation): tanh(z) = 1 - 2 / (exp(2z) + 1); clamp 2z at
    # 25 by the same overflow argument (tanh is 1.0 to f32 precision beyond).
    xx = x * x
    z2 = _GELU_2C * x + _GELU_2CB * (xx * x)
    d3 = jnp.exp(jnp.minimum(z2, 25.0)) + 1.0

    # Single merged reciprocal: EUP approx seed + one VPU Newton step
    # (dropping the Newton step leaves ~1e-3 output error -> keep it).
    d12 = d1 * d2
    d = d12 * d3
    r = pl.reciprocal(d, approx=True)
    r = r * (2.0 - d * r)

    numer = (k_ref[2] * (t * d2) + k_ref[3] * (num * d1)) * d3 - k_ref[4] * d12
    s = jnp.where(x >= 0.0, k_ref[0], k_ref[1]) + r * numer
    # NOTE: on a ragged last block the rows past the array edge hold garbage;
    # the math above runs on them (clamped, hence always finite) and Pallas
    # masks the corresponding stores -- do not "fix" this by masking compute.
    o_ref[...] = (x * s).astype(o_ref.dtype)


def _choose_tiling(rows, num_cores):
    """Pick (tile_rows, n_blocks).

    Single-TC chips (v5e/v6e): one block up to _MAX_TILE_ROWS -- extra grid
    steps there are a pure serial loop.  Multi-TC chips (v7x): >= 2 blocks per
    core for inputs above _MIN_SPLIT_ROWS so each core keeps its DMA pipeline
    full; block count rounded to a multiple of the core count for balance.
    """
    if rows <= _MAX_TILE_ROWS and (num_cores <= 1 or rows <= _MIN_SPLIT_ROWS):
        return rows, 1                               # single full-extent block
    n_steps = pl.cdiv(rows, _MAX_TILE_ROWS)
    if num_cores > 1:
        n_steps = _round_up(max(n_steps, 2 * num_cores), num_cores)
    tile_rows = min(_MAX_TILE_ROWS,
                    _round_up(pl.cdiv(rows, n_steps), _SUBLANE))
    return tile_rows, pl.cdiv(rows, tile_rows)


def mixed_activation(x, raw_weights):
    """Apply the mixed activation elementwise to x (any shape). raw_weights: (5,)."""
    # Parameter glue (tiny, in plain JAX): softmax the 5 architecture weights
    # and fold them into the coefficients of the x-factored, fraction-merged
    # kernel form (see _mixed_activation_kernel docstring).
    w = jax.nn.softmax(raw_weights.astype(jnp.float32), axis=0)
    coeffs = jnp.stack([
        w[0] + w[1] + w[4],     # k0: x >= 0 constant term (relu+leaky+gelu)
        0.2 * w[1] + w[4],      # k1: x <  0 constant term
        w[2],                   # k2: swish
        w[3],                   # k3: mish
        w[4],                   # k4: gelu tanh term (factor of 2 pre-folded)
    ])

    orig_shape = x.shape
    orig_dtype = x.dtype
    n = x.size
    flat = x.reshape(-1)

    # Lane-dense [rows, 128] slab.  No pad / slice HBM passes when
    # numel % 128 == 0; a ragged last *block* is auto-masked by Pallas.
    padded = (n % _LANE) != 0
    if padded:
        # TODO(synk): sizes that aren't a multiple of 128 still pay one pad and
        # one slice HBM pass; a fully general fix needs a manual-DMA tail path.
        flat = jnp.pad(flat, (0, _LANE - n % _LANE))
    rows = flat.size // _LANE
    x2d = flat.reshape(rows, _LANE)

    tile_rows, n_blocks = _choose_tiling(rows, _num_tensorcores())

    total = rows * _LANE
    itemsize = jnp.dtype(orig_dtype).itemsize
    cost = pl.CostEstimate(
        flops=30 * total,              # ~30 VALU ops / element
        transcendentals=3 * total,     # 2 exp + 1 approx reciprocal / element
        bytes_accessed=2 * total * itemsize,
    )

    out2d = pl.pallas_call(
        _mixed_activation_kernel,
        out_shape=jax.ShapeDtypeStruct((rows, _LANE), orig_dtype),
        grid_spec=pltpu.PrefetchScalarGridSpec(
            num_scalar_prefetch=1,     # coeffs -> SMEM once, before the grid
            grid=(n_blocks,),
            in_specs=[pl.BlockSpec((tile_rows, _LANE), lambda i, k: (i, 0))],
            out_specs=pl.BlockSpec((tile_rows, _LANE), lambda i, k: (i, 0)),
        ),
        compiler_params=pltpu.CompilerParams(
            dimension_semantics=("parallel",),
            # Double-buffered in+out at the largest tile is ~16 MiB; 32 MiB
            # leaves headroom and stays well under v7x's 64 MiB/TC.
            vmem_limit_bytes=32 * 1024 * 1024,
        ),
        cost_estimate=cost,
    )(coeffs, x2d)

    out_flat = out2d.reshape(-1)
    if padded:
        out_flat = out_flat[:n]
    return out_flat.reshape(orig_shape)


def _reference(x, raw_weights):
    """Pure-JAX reference mirroring the PyTorch forward exactly."""
    w = jax.nn.softmax(raw_weights.astype(jnp.float32), axis=0)
    xf = x.astype(jnp.float32)
    relu = jnp.maximum(xf, 0.0)
    leaky = jnp.where(xf >= 0.0, xf, 0.2 * xf)
    swish = xf * jax.nn.sigmoid(xf)
    mish = xf * jnp.tanh(jax.nn.softplus(xf))
    gelu = 0.5 * xf * (1.0 + jnp.tanh(_GELU_C * (xf + 0.044715 * xf ** 3)))
    return (w[0] * relu + w[1] * leaky + w[2] * swish
            + w[3] * mish + w[4] * gelu).astype(x.dtype)


if __name__ == "__main__":
    key = jax.random.PRNGKey(0)
    k_x, k_w = jax.random.split(key)

    # Small NCHW feature map consistent with the conv use of this activation.
    x = jax.random.normal(k_x, (2, 4, 16, 16), dtype=jnp.float32)
    # Deterministic synthetic parameter (torch.randn(5) analogue).
    raw_weights = jax.random.normal(k_w, (_NUM_ACTS,), dtype=jnp.float32)

    out = jax.block_until_ready(mixed_activation(x, raw_weights))
    ref = _reference(x, raw_weights)
    assert out.shape == x.shape and out.dtype == x.dtype
    assert jnp.allclose(out, ref, atol=1e-4, rtol=1e-4), (
        "mismatch vs reference: max abs err "
        f"{float(jnp.max(jnp.abs(out - ref)))}")

    # Awkward shape: exercises the pad fallback (numel % 128 != 0), the
    # generation-aware tiling, and the ragged (auto-masked) last block.
    x2 = jax.random.normal(jax.random.fold_in(k_x, 1), (1, 8, 100, 129),
                           dtype=jnp.float32)
    out2 = jax.block_until_ready(mixed_activation(x2, raw_weights))
    ref2 = _reference(x2, raw_weights)
    assert out2.shape == x2.shape and out2.dtype == x2.dtype
    assert jnp.allclose(out2, ref2, atol=1e-4, rtol=1e-4), (
        "mismatch vs reference (ragged case): max abs err "
        f"{float(jnp.max(jnp.abs(out2 - ref2)))}")

    print("KERNEL_OK")
</pallas_src>

<mosaic_0001>
module attributes {stable_mosaic.version = 11 : i64} {
  func.func @_mixed_activation_kernel(%arg0: i32, %arg1: memref<5xf32, #tpu.memory_space<smem>>, %arg2: memref<16x128xf32, #tpu.memory_space<vmem>>, %arg3: memref<16x128xf32, #tpu.memory_space<vmem>>) attributes {dimension_semantics = [#tpu.dimension_semantics<parallel>], iteration_bounds = array<i64: 1>, scalar_prefetch = 1 : i64, scratch_operands = 0 : i64, tpu.core_type = #tpu.core_type<tc>, window_params = [{transform_indices = @transform_0, window_bounds = array<i64: 16, 128>}, {transform_indices = @transform_1, window_bounds = array<i64: 16, 128>}]} {
    %c0 = arith.constant 0 : index
    %c0_0 = arith.constant 0 : index
    %0 = vector.load %arg2[%c0, %c0_0] : memref<16x128xf32, #tpu.memory_space<vmem>>, vector<16x128xf32>
    %cst = arith.constant 1.500000e+01 : f32
    %1 = vector.broadcast %cst : f32 to vector<16x128xf32>
    %2 = arith.minimumf %0, %1 : vector<16x128xf32>
    %3 = math.exp %2 : vector<16x128xf32>
    %cst_1 = arith.constant 1.000000e+00 : f32
    %4 = vector.broadcast %cst_1 : f32 to vector<16x128xf32>
    %5 = arith.addf %3, %4 : vector<16x128xf32>
    %cst_2 = arith.constant 2.000000e+00 : f32
    %6 = vector.broadcast %cst_2 : f32 to vector<16x128xf32>
    %7 = arith.addf %3, %6 : vector<16x128xf32>
    %8 = arith.mulf %3, %7 : vector<16x128xf32>
    %cst_3 = arith.constant 2.000000e+00 : f32
    %9 = vector.broadcast %cst_3 : f32 to vector<16x128xf32>
    %10 = arith.addf %8, %9 : vector<16x128xf32>
    %11 = arith.mulf %0, %0 : vector<16x128xf32>
    %cst_4 = arith.constant 1.59576917 : f32
    %12 = vector.broadcast %cst_4 : f32 to vector<16x128xf32>
    %13 = arith.mulf %12, %0 : vector<16x128xf32>
    %14 = arith.mulf %11, %0 : vector<16x128xf32>
    %cst_5 = arith.constant 0.0713548139 : f32
    %15 = vector.broadcast %cst_5 : f32 to vector<16x128xf32>
    %16 = arith.mulf %15, %14 : vector<16x128xf32>
    %17 = arith.addf %13, %16 : vector<16x128xf32>
    %cst_6 = arith.constant 2.500000e+01 : f32
    %18 = vector.broadcast %cst_6 : f32 to vector<16x128xf32>
    %19 = arith.minimumf %17, %18 : vector<16x128xf32>
    %20 = math.exp %19 : vector<16x128xf32>
    %cst_7 = arith.constant 1.000000e+00 : f32
    %21 = vector.broadcast %cst_7 : f32 to vector<16x128xf32>
    %22 = arith.addf %20, %21 : vector<16x128xf32>
    %23 = arith.mulf %5, %10 : vector<16x128xf32>
    %24 = arith.mulf %23, %22 : vector<16x128xf32>
    %25 = tpu.reciprocal %24 {approx = true} : vector<16x128xf32> -> vector<16x128xf32>
    %26 = arith.mulf %24, %25 : vector<16x128xf32>
    %cst_8 = arith.constant 2.000000e+00 : f32
    %27 = vector.broadcast %cst_8 : f32 to vector<16x128xf32>
    %28 = arith.subf %27, %26 : vector<16x128xf32>
    %29 = arith.mulf %25, %28 : vector<16x128xf32>
    %c2 = arith.constant 2 : index
    %30 = memref.load %arg1[%c2] : memref<5xf32, #tpu.memory_space<smem>>
    %31 = arith.mulf %3, %10 : vector<16x128xf32>
    %32 = vector.broadcast %30 : f32 to vector<16x128xf32>
    %33 = arith.mulf %32, %31 : vector<16x128xf32>
    %c3 = arith.constant 3 : index
    %34 = memref.load %arg1[%c3] : memref<5xf32, #tpu.memory_space<smem>>
    %35 = arith.mulf %8, %5 : vector<16x128xf32>
    %36 = vector.broadcast %34 : f32 to vector<16x128xf32>
    %37 = arith.mulf %36, %35 : vector<16x128xf32>
    %38 = arith.addf %33, %37 : vector<16x128xf32>
    %39 = arith.mulf %38, %22 : vector<16x128xf32>
    %c4 = arith.constant 4 : index
    %40 = memref.load %arg1[%c4] : memref<5xf32, #tpu.memory_space<smem>>
    %41 = vector.broadcast %40 : f32 to vector<16x128xf32>
    %42 = arith.mulf %41, %23 : vector<16x128xf32>
    %43 = arith.subf %39, %42 : vector<16x128xf32>
    %cst_9 = arith.constant 0.000000e+00 : f32
    %44 = vector.broadcast %cst_9 : f32 to vector<16x128xf32>
    %45 = arith.cmpf oge, %0, %44 : vector<16x128xf32>
    %c0_10 = arith.constant 0 : index
    %46 = memref.load %arg1[%c0_10] : memref<5xf32, #tpu.memory_space<smem>>
    %c1 = arith.constant 1 : index
    %47 = memref.load %arg1[%c1] : memref<5xf32, #tpu.memory_space<smem>>
    %48 = vector.broadcast %46 : f32 to vector<16x128xf32>
    %49 = vector.broadcast %47 : f32 to vector<16x128xf32>
    %50 = arith.select %45, %48, %49 : vector<16x128xi1>, vector<16x128xf32>
    %51 = arith.mulf %29, %43 : vector<16x128xf32>
    %52 = arith.addf %50, %51 : vector<16x128xf32>
    %53 = arith.mulf %0, %52 : vector<16x128xf32>
    %c0_11 = arith.constant 0 : index
    %c0_12 = arith.constant 0 : index
    %54 = vector.load %arg3[%c0_11, %c0_12] : memref<16x128xf32, #tpu.memory_space<vmem>>, vector<16x128xf32>
    tpu.vector_store %arg3[%c0_11, %c0_12], %53 {strides = array<i32>} : memref<16x128xf32, #tpu.memory_space<vmem>>, vector<16x128xf32>,
    return
  }
  func.func @transform_0(%arg0: i32, %arg1: memref<5xf32, #tpu.memory_space<smem>>) -> (i32, i32) {
    %c0_i32 = arith.constant 0 : i32
    %c0_i32_0 = arith.constant 0 : i32
    return %arg0, %c0_i32 : i32, i32
  }
  func.func @transform_1(%arg0: i32, %arg1: memref<5xf32, #tpu.memory_space<smem>>) -> (i32, i32) {
    %c0_i32 = arith.constant 0 : i32
    %c0_i32_0 = arith.constant 0 : i32
    return %arg0, %c0_i32 : i32, i32
  }
}

</mosaic_0001>

<llo_original>
// kernel: tpu_custom_call.1
$region0: #{tpu_custom_call.1}
  #allocation0 [shape = 'u32[]', space=smem, size = 0x4, offset = 0x4, fixed_abs, tag = 'smem constant byte address 0x4 - core index']
  #allocation1 [shape = 'u32[144,128]{1,0:T(1,128)}', space=vmem, size = 0x12000, scoped, tag = 'internal scratch']
  #allocation2 [shape = 's32[1]{0}', space=sflag, size = 0x4, scoped, tag = 'scoped memory for tpu_custom_call.1']
  #allocation3 [shape = 'u8[512]{0}', space=smem, size = 0x200, scoped, tag = 'prefetched SMEM operand 0']
  %s0 = inlined_call_operand.hbm [shape: f32[5], index: 0, kind: input, shape index: {}]
  %s1 = inlined_call_operand.hbm [shape: f32[16,128], index: 1, kind: input, shape index: {}]
  %s2 = inlined_call_operand.hbm [shape: f32[16,128], index: 2, kind: output, shape index: {}]
  %s3 = sld [smem:[#allocation0]]
  $region18: #{tpu_custom_call.1} parent=0
    _
  %s5 = ssub.s32 1, %s3
  %s6 = scalar_select 0, %s5, %s3
  %8 = dma.hbm_to_smem %s0, 16, [#allocation3], [#allocation2]
  %9 = dma.done [#allocation2], 16
  %10 = sfence
  $region1: #{tpu_custom_call.1} parent=0
    #allocation4 [shape = 'u8[8192]{0}', space=vmem, size = 0x2000, scoped, tag = 'input window, operand 1, single buffered']
    #allocation5 [shape = 's32[1]{0}', space=sflag, size = 0x4, scoped, tag = 'scoped memory for tpu_custom_call.1']
    #allocation6 [shape = 's32[1]{0}', space=sflag, size = 0x4, scoped, tag = 'scoped memory for tpu_custom_call.1']
    #allocation7 [shape = 'u8[8192]{0}', space=vmem, size = 0x2000, scoped, tag = 'output window, operand 0, single buffered']
    %11 = vsyncpa [#allocation5], 0
    %12 = vsyncpa [#allocation6], 0
    // Predicated region
    $region2: #{tpu_custom_call.1} parent=1 // pred_check
      _
    $region3: #{tpu_custom_call.1} parent=1 // pred_check_branch
      %14 = sbr.rel (0) target = $region5
    $region4: #{tpu_custom_call.1} parent=1 // pred_region
      %s16 = ssub.s32 256, 256
      %17 = vsyncadd [#allocation5], %s16
      %s18 = sshll.u32 [#allocation4], 4
      %s19 = int_to_ptr.vmem [resolvable:$true] %s18
      %24 = dma.hbm_to_vmem [thread:$0]  %s1, 256, %s19, [#allocation5], 128, 128, 8
    $region5: #{tpu_custom_call.1} parent=1 // pred_fallthru
      _
    // Predicated region
    $region6: #{tpu_custom_call.1} parent=1 // pred_check
      _
    $region7: #{tpu_custom_call.1} parent=1 // pred_check_branch
      %26 = sbr.rel (0) target = $region9
    $region8: #{tpu_custom_call.1} parent=1 // pred_region
      %27 = dma.done [#allocation5], 256
    $region9: #{tpu_custom_call.1} parent=1 // pred_fallthru
      _
    %v28 = vld [vmem:[#allocation4] sm:$0xff]
    %v29 = vld [vmem:[#allocation4 + $0x8] sm:$0xff]
    %v30 = vmin.f32 %v28, 15.0
    %v31 = vmin.f32 %v29, 15.0
    %v32 = vmul.f32 %v30, 1.442695
    %v33 = vpow.pop %v32
    %v34 = vmul.f32 %v31, 1.442695
    %v35 = vpow.pop %v34
    %v36 = vadd.f32 %v33, 1.0
    %v37 = vadd.f32 %v35, 1.0
    %v38 = vadd.f32 %v33, 2.0
    %v39 = vadd.f32 %v35, 2.0
    %v40 = vmul.f32 %v33, %v38
    %v41 = vmul.f32 %v35, %v39
    %v42 = vadd.f32 %v40, 2.0
    %v43 = vadd.f32 %v41, 2.0
    %v44 = vmul.f32 %v28, %v28
    %v45 = vmul.f32 %v29, %v29
    %v46 = vmul.f32 %v28, 1.5957692
    %v47 = vmul.f32 %v29, 1.5957692
    %v48 = vmul.f32 %v44, %v28
    %v49 = vmul.f32 %v45, %v29
    %v50 = vmul.f32 %v48, 0.071354814
    %v51 = vmul.f32 %v49, 0.071354814
    %v52 = vadd.f32 %v46, %v50
    %v53 = vadd.f32 %v47, %v51
    %v54 = vmin.f32 %v52, 25.0
    %v55 = vmin.f32 %v53, 25.0
    %v56 = vmul.f32 %v54, 1.442695
    %v57 = vpow.pop %v56
    %v58 = vmul.f32 %v55, 1.442695
    %v59 = vpow.pop %v58
    %v60 = vadd.f32 %v57, 1.0
    %v61 = vadd.f32 %v59, 1.0
    %v62 = vmul.f32 %v36, %v42
    %v63 = vmul.f32 %v37, %v43
    %v64 = vmul.f32 %v62, %v60
    %v65 = vmul.f32 %v63, %v61
    %v66 = vrcp.pop %v64
    %v67 = vrcp.pop %v65
    %v68 = vmul.f32 %v64, %v66
    %v69 = vmul.f32 %v65, %v67
    %v70 = vsub.f32 2.0, %v68
    %v71 = vsub.f32 2.0, %v69
    %v72 = vmul.f32 %v66, %v70
    %v73 = vmul.f32 %v67, %v71
    %s74 = sld [smem:[#allocation3 + $0x2]]
    %v75 = vmul.f32 %v33, %v42
    %v76 = vmul.f32 %v35, %v43
    %v77 = vstv %s74
    %v78 = vmul.f32 %v77, %v75
    %v79 = vmul.f32 %v77, %v76
    %s80 = sld [smem:[#allocation3 + $0x3]]
    %v81 = vmul.f32 %v40, %v36
    %v82 = vmul.f32 %v41, %v37
    %v83 = vstv %s80
    %v84 = vmul.f32 %v83, %v81
    %v85 = vmul.f32 %v83, %v82
    %v86 = vadd.f32 %v78, %v84
    %v87 = vadd.f32 %v79, %v85
    %v88 = vmul.f32 %v86, %v60
    %v89 = vmul.f32 %v87, %v61
    %s90 = sld [smem:[#allocation3 + $0x4]]
    %v91 = vstv %s90
    %v92 = vmul.f32 %v91, %v62
    %v93 = vmul.f32 %v91, %v63
    %v94 = vsub.f32 %v88, %v92
    %v95 = vsub.f32 %v89, %v93
    %vm96 = vcmp.ge.f32.partialorder %v28, 0.0
    %vm97 = vcmp.ge.f32.partialorder %v29, 0.0
    %s98 = sld [smem:[#allocation3]]
    %s99 = sld [smem:[#allocation3 + $0x1]]
    %v100 = vstv %s98
    %v101 = vstv %s99
    %v102 = vsel %vm96, %v100, %v101
    %v103 = vsel %vm97, %v100, %v101
    %v104 = vmul.f32 %v72, %v94
    %v105 = vmul.f32 %v73, %v95
    %v106 = vadd.f32 %v102, %v104
    %v107 = vadd.f32 %v103, %v105
    %v108 = vmul.f32 %v28, %v106
    %v109 = vmul.f32 %v29, %v107
    %110 = vst [vmem:[#allocation7] sm:$0xff] %v108
    %111 = vst [vmem:[#allocation7 + $0x8] sm:$0xff] %v109
    // Predicated region
    $region10: #{tpu_custom_call.1} parent=1 // pred_check
      _
    $region11: #{tpu_custom_call.1} parent=1 // pred_check_branch
      %113 = sbr.rel (0) target = $region13
    $region12: #{tpu_custom_call.1} parent=1 // pred_region
      %s115 = ssub.s32 256, 256
      %116 = vsyncadd [#allocation6], %s115
      %s117 = sshll.u32 [#allocation7], 4
      %s118 = int_to_ptr.vmem [resolvable:$true] %s117
      %123 = dma.vmem_to_hbm [thread:$0]  %s118, 256, %s2, [#allocation6], 128, 128, 8
    $region13: #{tpu_custom_call.1} parent=1 // pred_fallthru
      _
    // Predicated region
    $region14: #{tpu_custom_call.1} parent=1 // pred_check
      _
    $region15: #{tpu_custom_call.1} parent=1 // pred_check_branch
      %125 = sbr.rel (0) target = $region17
    $region16: #{tpu_custom_call.1} parent=1 // pred_region
      %126 = dma.done [#allocation6], 256
    $region17: #{tpu_custom_call.1} parent=1 // pred_fallthru
      _
    %127 = vsyncpa [#allocation5], 1
    %128 = vsyncpa [#allocation6], 1

</llo_original>
